<compile_context>
chip_gen: v7x
topology: tpu7x:2x2x1
jax: 0.10.0
libtpu: 0.0.40
codegen_flags: <defaults>
</compile_context>

<pallas_src>
import jax
import jax.numpy as jnp
from jax.experimental import pallas as pl
from jax.experimental.pallas import tpu as pltpu

LANE = 128
SUBLANE = 8  # f32 sublane count; batch tiles are multiples of this


def _round_up(v, m):
    return ((v + m - 1) // m) * m


def _choose_batch_tile(B, block_b):
    """Pick the batch tile.

    * B < 16: a single full-extent block (legal for any B, grid = 1).
    * otherwise: a multiple of 8, capped at block_b and at ~B/2 so the 1-D
      "parallel" grid has >= 2 steps (lets v7x shard steps across both TCs).
    """
    if B < 2 * SUBLANE:
        return B
    half = _round_up((B + 1) // 2, SUBLANE)
    return max(SUBLANE, min(block_b, half))


def prepare_mlp_params(w1, b1, w2, b2, w3, b3):
    """One-time model setup (NOT per forward call).

    Pads every feature dim to a multiple of 128 lanes, casts the matmul operands to
    bfloat16, and packs the three weight matrices / three bias rows into two buffers so
    the kernel issues 3 input DMAs (x + weights + biases) instead of 7. Padded logit
    columns get a -1e30 bias (kept in f32) so softmax sends them exactly to 0.
    """
    d_in, h1 = w1.shape
    h2 = w2.shape[1]
    d_out = w3.shape[1]
    h1p = _round_up(h1, LANE)
    h2p = _round_up(h2, LANE)
    d_outp = _round_up(d_out, LANE)
    width = max(h1p, h2p, d_outp)

    rows = d_in + h1p + h2p  # [w1 rows | w2 rows | w3 rows]
    wp = jnp.zeros((rows, width), jnp.bfloat16)
    wp = wp.at[:d_in, :h1].set(w1.astype(jnp.bfloat16))
    wp = wp.at[d_in:d_in + h1, :h2].set(w2.astype(jnp.bfloat16))
    wp = wp.at[d_in + h1p:d_in + h1p + h2, :d_out].set(w3.astype(jnp.bfloat16))

    bp = jnp.zeros((3, width), jnp.float32)
    bp = bp.at[0, :h1].set(b1.reshape(-1).astype(jnp.float32))
    bp = bp.at[1, :h2].set(b2.reshape(-1).astype(jnp.float32))
    b3_row = jnp.full((d_outp,), -1e30, jnp.float32).at[:d_out].set(
        b3.reshape(-1).astype(jnp.float32))
    bp = bp.at[2, :d_outp].set(b3_row)

    dims = dict(d_in=d_in, h1p=h1p, h2p=h2p, d_out=d_out, d_outp=d_outp)
    return wp, bp, dims


def make_mlp_forward(dims, *, block_b=1024):
    """Build a jitted forward closed over the static (padded) dimensions."""
    d_in = dims["d_in"]
    h1p = dims["h1p"]
    h2p = dims["h2p"]
    d_out = dims["d_out"]
    d_outp = dims["d_outp"]
    w2_off = d_in          # row offsets into the packed weight buffer
    w3_off = d_in + h1p    # (multiples of 16 here -> bf16-tile-aligned slices)

    def kernel(x_ref, w_ref, b_ref, o_ref):
        # bf16 MXU operands, f32 accumulation / elementwise. x is cast at the MXU
        # boundary (no wrapper-side cast/pad pass over x).
        x = x_ref[...].astype(jnp.bfloat16)                      # (tb, d_in)
        w1 = w_ref[0:d_in, 0:h1p]                                # static, aligned slices
        w2 = w_ref[w2_off:w2_off + h1p, 0:h2p]
        w3 = w_ref[w3_off:w3_off + h2p, 0:d_outp]
        b1 = b_ref[0:1, 0:h1p]
        b2 = b_ref[1:2, 0:h2p]
        b3 = b_ref[2:3, 0:d_outp]                                # padded cols = -1e30

        h1 = jnp.maximum(
            jnp.dot(x, w1, preferred_element_type=jnp.float32) + b1, 0.0)
        h2 = jnp.maximum(
            jnp.dot(h1.astype(jnp.bfloat16), w2,
                    preferred_element_type=jnp.float32) + b2, 0.0)
        logits = jnp.dot(h2.astype(jnp.bfloat16), w3,
                         preferred_element_type=jnp.float32) + b3

        # Numerically stable softmax in f32. Exact divide (the previous approx
        # reciprocal broke the row-sum == 1 check); padded logits underflow to 0.
        m = jnp.max(logits, axis=-1, keepdims=True)
        e = jnp.exp(logits - m)
        denom = jnp.sum(e, axis=-1, keepdims=True)
        o_ref[...] = (e / denom).astype(o_ref.dtype)             # bf16 writeback

    @jax.jit
    def forward(x, wp, bp):
        B = x.shape[0]
        tb = _choose_batch_tile(B, block_b)
        grid = pl.cdiv(B, tb)
        out = pl.pallas_call(
            kernel,
            out_shape=jax.ShapeDtypeStruct((B, d_outp), jnp.bfloat16),
            grid_spec=pltpu.PrefetchScalarGridSpec(
                num_scalar_prefetch=0,
                grid=(grid,),
                in_specs=[
                    # x: tiled over batch, features untouched (full-extent last dim).
                    pl.BlockSpec((tb, d_in), lambda i: (i, 0)),
                    # packed weights / biases: constant index_map -> DMA'd once and
                    # VMEM-resident across every grid step.
                    pl.BlockSpec(wp.shape, lambda i: (0, 0)),
                    pl.BlockSpec(bp.shape, lambda i: (0, 0)),
                ],
                out_specs=pl.BlockSpec((tb, d_outp), lambda i: (i, 0)),  # lane-dense
            ),
            compiler_params=pltpu.CompilerParams(
                dimension_semantics=("parallel",)),
        )(x, wp, bp)
        # Keep only the real softmax columns; the tiny (B, d_out) slab goes back to f32.
        return out[:, :d_out].astype(jnp.float32)

    return forward


def init_linear(key, fan_in, fan_out):
    # Mirror PyTorch nn.Linear default init: U(-1/sqrt(fan_in), 1/sqrt(fan_in)).
    kw, kb = jax.random.split(key)
    bound = 1.0 / jnp.sqrt(jnp.float32(fan_in))
    # stored as (in, out): transpose of PyTorch's (out, in)
    w = jax.random.uniform(kw, (fan_in, fan_out), jnp.float32, -bound, bound)
    b = jax.random.uniform(kb, (1, fan_out), jnp.float32, -bound, bound)
    return w, b


if __name__ == "__main__":
    input_size, hidden1, hidden2, output_size = 512, 100, 10, 3
    batch = 8

    key = jax.random.PRNGKey(0)
    kx, k1, k2, k3 = jax.random.split(key, 4)

    x = jax.random.normal(kx, (batch, input_size), jnp.float32)
    w1, b1 = init_linear(k1, input_size, hidden1)
    w2, b2 = init_linear(k2, hidden1, hidden2)
    w3, b3 = init_linear(k3, hidden2, output_size)

    # One-time setup: pad / cast / pack the weights, then build the jitted forward.
    wp, bp, dims = prepare_mlp_params(w1, b1, w2, b2, w3, b3)
    mlp_forward = make_mlp_forward(dims)

    out = jax.block_until_ready(mlp_forward(x, wp, bp))
    assert out.shape == (batch, output_size)
    assert bool(jnp.all(jnp.isfinite(out)))

    # Reference 1: mirrors the kernel's matmul numerics (bf16 operands, f32 accumulate).
    # Tolerance covers the bf16 output writeback quantization (<= ~2e-3).
    xb = x.astype(jnp.bfloat16)
    w1b, w2b, w3b = (w.astype(jnp.bfloat16) for w in (w1, w2, w3))
    r = jnp.maximum(jnp.dot(xb, w1b, preferred_element_type=jnp.float32) + b1, 0.0)
    r = jnp.maximum(jnp.dot(r.astype(jnp.bfloat16), w2b,
                            preferred_element_type=jnp.float32) + b2, 0.0)
    r = jnp.dot(r.astype(jnp.bfloat16), w3b, preferred_element_type=jnp.float32) + b3
    ref_bf16 = jax.nn.softmax(r, axis=1)
    assert jnp.allclose(out, ref_bf16, atol=8e-3, rtol=8e-3)

    # Reference 2: full-f32 PyTorch-equivalent forward (looser tol covers bf16 weights).
    ref_f32 = jnp.maximum(x @ w1 + b1, 0.0)
    ref_f32 = jnp.maximum(ref_f32 @ w2 + b2, 0.0)
    ref_f32 = jax.nn.softmax(ref_f32 @ w3 + b3, axis=1)
    assert jnp.allclose(out, ref_f32, atol=3e-2, rtol=3e-2)

    # Rows of a softmax must sum to 1 (tolerance covers bf16 output quantization).
    assert jnp.allclose(jnp.sum(out, axis=1), 1.0, atol=1e-2)

    print("KERNEL_OK")
</pallas_src>

<mosaic_0001>
module attributes {stable_mosaic.version = 11 : i64} {
  func.func @kernel(%arg0: i32, %arg1: memref<8x512xf32, #tpu.memory_space<vmem>>, %arg2: memref<768x128xbf16, #tpu.memory_space<vmem>>, %arg3: memref<3x128xf32, #tpu.memory_space<vmem>>, %arg4: memref<8x128xbf16, #tpu.memory_space<vmem>>) attributes {dimension_semantics = [#tpu.dimension_semantics<parallel>], iteration_bounds = array<i64: 1>, scalar_prefetch = 0 : i64, scratch_operands = 0 : i64, tpu.core_type = #tpu.core_type<tc>, window_params = [{transform_indices = @transform_0, window_bounds = array<i64: 8, 512>}, {pipeline_mode = #tpu.pipeline_mode<synchronous>, transform_indices = @transform_1, window_bounds = array<i64: 768, 128>}, {pipeline_mode = #tpu.pipeline_mode<synchronous>, transform_indices = @transform_2, window_bounds = array<i64: 3, 128>}, {transform_indices = @transform_3, window_bounds = array<i64: 8, 128>}]} {
    %c0 = arith.constant 0 : index
    %c0_0 = arith.constant 0 : index
    %0 = vector.load %arg1[%c0, %c0_0] : memref<8x512xf32, #tpu.memory_space<vmem>>, vector<8x512xf32>
    %1 = arith.truncf %0 : vector<8x512xf32> to vector<8x512xbf16>
    %c0_1 = arith.constant 0 : index
    %c0_2 = arith.constant 0 : index
    %2 = vector.load %arg2[%c0_1, %c0_2] : memref<768x128xbf16, #tpu.memory_space<vmem>>, vector<512x128xbf16>
    %c512 = arith.constant 512 : index
    %c0_3 = arith.constant 0 : index
    %3 = vector.load %arg2[%c512, %c0_3] : memref<768x128xbf16, #tpu.memory_space<vmem>>, vector<128x128xbf16>
    %c640 = arith.constant 640 : index
    %c0_4 = arith.constant 0 : index
    %4 = vector.load %arg2[%c640, %c0_4] : memref<768x128xbf16, #tpu.memory_space<vmem>>, vector<128x128xbf16>
    %c0_5 = arith.constant 0 : index
    %c0_6 = arith.constant 0 : index
    %5 = vector.load %arg3[%c0_5, %c0_6] : memref<3x128xf32, #tpu.memory_space<vmem>>, vector<1x128xf32>
    %c1 = arith.constant 1 : index
    %c0_7 = arith.constant 0 : index
    %6 = vector.load %arg3[%c1, %c0_7] : memref<3x128xf32, #tpu.memory_space<vmem>>, vector<1x128xf32>
    %c2 = arith.constant 2 : index
    %c0_8 = arith.constant 0 : index
    %7 = vector.load %arg3[%c2, %c0_8] : memref<3x128xf32, #tpu.memory_space<vmem>>, vector<1x128xf32>
    %cst = arith.constant dense<0.000000e+00> : vector<8x128xf32>
    %8 = tpu.matmul %1, %2, %cst {dimension_numbers = #tpu.dot_dimension_numbers<[1], [0], [0], [1], [0, 0, 1, 1], [], []>} : vector<8x512xbf16>, vector<512x128xbf16>, vector<8x128xf32> -> vector<8x128xf32>
    %9 = vector.broadcast %5 : vector<1x128xf32> to vector<8x128xf32>
    %10 = arith.addf %8, %9 : vector<8x128xf32>
    %cst_9 = arith.constant 0.000000e+00 : f32
    %11 = vector.broadcast %cst_9 : f32 to vector<8x128xf32>
    %12 = arith.maximumf %10, %11 : vector<8x128xf32>
    %13 = arith.truncf %12 : vector<8x128xf32> to vector<8x128xbf16>
    %cst_10 = arith.constant dense<0.000000e+00> : vector<8x128xf32>
    %14 = tpu.matmul %13, %3, %cst_10 {dimension_numbers = #tpu.dot_dimension_numbers<[1], [0], [0], [1], [0, 0, 1, 1], [], []>} : vector<8x128xbf16>, vector<128x128xbf16>, vector<8x128xf32> -> vector<8x128xf32>
    %15 = vector.broadcast %6 : vector<1x128xf32> to vector<8x128xf32>
    %16 = arith.addf %14, %15 : vector<8x128xf32>
    %cst_11 = arith.constant 0.000000e+00 : f32
    %17 = vector.broadcast %cst_11 : f32 to vector<8x128xf32>
    %18 = arith.maximumf %16, %17 : vector<8x128xf32>
    %19 = arith.truncf %18 : vector<8x128xf32> to vector<8x128xbf16>
    %cst_12 = arith.constant dense<0.000000e+00> : vector<8x128xf32>
    %20 = tpu.matmul %19, %4, %cst_12 {dimension_numbers = #tpu.dot_dimension_numbers<[1], [0], [0], [1], [0, 0, 1, 1], [], []>} : vector<8x128xbf16>, vector<128x128xbf16>, vector<8x128xf32> -> vector<8x128xf32>
    %21 = vector.broadcast %7 : vector<1x128xf32> to vector<8x128xf32>
    %22 = arith.addf %20, %21 : vector<8x128xf32>
    %cst_13 = arith.constant dense<0xFF800000> : vector<8xf32>
    %23 = vector.multi_reduction <maximumf>, %22, %cst_13 [1] : vector<8x128xf32> to vector<8xf32>
    %24 = vector.shape_cast %23 : vector<8xf32> to vector<8x1xf32>
    %25 = vector.broadcast %24 : vector<8x1xf32> to vector<8x128xf32>
    %26 = arith.subf %22, %25 : vector<8x128xf32>
    %27 = math.exp %26 : vector<8x128xf32>
    %cst_14 = arith.constant dense<0.000000e+00> : vector<8xf32>
    %28 = vector.multi_reduction <add>, %27, %cst_14 [1] : vector<8x128xf32> to vector<8xf32>
    %29 = vector.shape_cast %28 : vector<8xf32> to vector<8x1xf32>
    %30 = vector.broadcast %29 : vector<8x1xf32> to vector<8x128xf32>
    %31 = arith.divf %27, %30 : vector<8x128xf32>
    %32 = arith.truncf %31 : vector<8x128xf32> to vector<8x128xbf16>
    %c0_15 = arith.constant 0 : index
    %c0_16 = arith.constant 0 : index
    %33 = vector.load %arg4[%c0_15, %c0_16] : memref<8x128xbf16, #tpu.memory_space<vmem>>, vector<8x128xbf16>
    tpu.vector_store %arg4[%c0_15, %c0_16], %32 {strides = array<i32>} : memref<8x128xbf16, #tpu.memory_space<vmem>>, vector<8x128xbf16>,
    return
  }
  func.func @transform_0(%arg0: i32) -> (i32, i32) {
    %c0_i32 = arith.constant 0 : i32
    %c0_i32_0 = arith.constant 0 : i32
    return %arg0, %c0_i32 : i32, i32
  }
  func.func @transform_1(%arg0: i32) -> (i32, i32) {
    %c0_i32 = arith.constant 0 : i32
    %c0_i32_0 = arith.constant 0 : i32
    %c0_i32_1 = arith.constant 0 : i32
    return %c0_i32, %c0_i32_0 : i32, i32
  }
  func.func @transform_2(%arg0: i32) -> (i32, i32) {
    %c0_i32 = arith.constant 0 : i32
    %c0_i32_0 = arith.constant 0 : i32
    %c0_i32_1 = arith.constant 0 : i32
    return %c0_i32, %c0_i32_0 : i32, i32
  }
  func.func @transform_3(%arg0: i32) -> (i32, i32) {
    %c0_i32 = arith.constant 0 : i32
    %c0_i32_0 = arith.constant 0 : i32
    return %arg0, %c0_i32 : i32, i32
  }
}

</mosaic_0001>

<llo_original>
// kernel: forward.1
$region0: #{forward.1}
  #allocation0 [shape = 'u32[]', space=smem, size = 0x4, offset = 0x4, fixed_abs, tag = 'smem constant byte address 0x4 - core index']
  #allocation1 [shape = 'u32[144,128]{1,0:T(1,128)}', space=vmem, size = 0x12000, scoped, tag = 'internal scratch']
  %s0 = inlined_call_operand.hbm [shape: f32[8,512], index: 0, kind: input, shape index: {}]
  %s1 = inlined_call_operand.hbm [shape: bf16[768,128], index: 1, kind: input, shape index: {}]
  %s2 = inlined_call_operand.vmem [shape: f32[3,128], index: 2, kind: input, shape index: {}]
  %s3 = inlined_call_operand.vmem [shape: bf16[8,128], index: 3, kind: output, shape index: {}]
  %s4 = sld [smem:[#allocation0]]
  $region30: #{forward.1} parent=0
    _
  %s6 = ssub.s32 1, %s4
  %s7 = scalar_select 0, %s6, %s4
  $region1: #{forward.1} parent=0
    #allocation2 [shape = 'u8[16384]{0}', space=vmem, size = 0x4000, scoped, tag = 'input window, operand 0, single buffered']
    #allocation3 [shape = 's32[1]{0}', space=sflag, size = 0x4, scoped, tag = 'scoped memory for forward.1']
    #allocation4 [shape = 'u8[196608]{0}', space=vmem, size = 0x30000, scoped, tag = 'input window, operand 1, single buffered']
    #allocation5 [shape = 's32[1]{0}', space=sflag, size = 0x4, scoped, tag = 'scoped memory for forward.1']
    %8 = vsyncpa [#allocation3], 0
    %9 = vsyncpa [#allocation5], 0
    // Predicated region
    $region2: #{forward.1} parent=1 // pred_check
      _
    $region3: #{forward.1} parent=1 // pred_check_branch
      %11 = sbr.rel (0) target = $region5
    $region4: #{forward.1} parent=1 // pred_region
      %s13 = ssub.s32 512, 512
      %14 = vsyncadd [#allocation3], %s13
      %s16 = sshll.u32 [#allocation2], 4
      %s17 = int_to_ptr.vmem [resolvable:$true] %s16
      %19 = dma.hbm_to_vmem [thread:$0]  %s0, 512, %s17, [#allocation3]
    $region5: #{forward.1} parent=1 // pred_fallthru
      _
    // Predicated region
    $region6: #{forward.1} parent=1 // pred_check
      _
    $region7: #{forward.1} parent=1 // pred_check_branch
      %21 = sbr.rel (0) target = $region9
    $region8: #{forward.1} parent=1 // pred_region
      %s23 = ssub.s32 6144, 6144
      %24 = vsyncadd [#allocation5], %s23
      %s25 = sshll.u32 [#allocation4], 4
      %s26 = int_to_ptr.vmem [resolvable:$true] %s25
      %31 = dma.hbm_to_vmem [thread:$0]  %s1, 6144, %s26, [#allocation5], 64, 64, 4
    $region9: #{forward.1} parent=1 // pred_fallthru
      _
    // Predicated region
    $region10: #{forward.1} parent=1 // pred_check
      _
    $region11: #{forward.1} parent=1 // pred_check_branch
      %33 = sbr.rel (0) target = $region13
    $region12: #{forward.1} parent=1 // pred_region
      _
    $region13: #{forward.1} parent=1 // pred_fallthru
      _
    // Predicated region
    $region14: #{forward.1} parent=1 // pred_check
      _
    $region15: #{forward.1} parent=1 // pred_check_branch
      %35 = sbr.rel (0) target = $region17
    $region16: #{forward.1} parent=1 // pred_region
      %36 = dma.done [#allocation3], 512
    $region17: #{forward.1} parent=1 // pred_fallthru
      _
    // Predicated region
    $region18: #{forward.1} parent=1 // pred_check
      _
    $region19: #{forward.1} parent=1 // pred_check_branch
      %38 = sbr.rel (0) target = $region21
    $region20: #{forward.1} parent=1 // pred_region
      %39 = dma.done [#allocation5], 6144
    $region21: #{forward.1} parent=1 // pred_fallthru
      _
    %v41 = vld [vmem:[#allocation2] sm:$0xff]
    %v42 = vld [vmem:[#allocation2 + $0x8] sm:$0xff]
    %v43 = vld [vmem:[#allocation2 + $0x10] sm:$0xff]
    %v44 = vld [vmem:[#allocation2 + $0x18] sm:$0xff]
    %v45 = vpack.c.bf16 %v41, %v41
    %v46 = vpack.c.bf16 %v42, %v42
    %v47 = vpack.c.bf16 %v43, %v43
    %v48 = vpack.c.bf16 %v44, %v44
    %v49 = vld [vmem:[#allocation4] sm:$0xf]
    %v50 = vld [vmem:[#allocation4 + $0x4] sm:$0xf]
    %v51 = vld [vmem:[#allocation4 + $0x8] sm:$0xf]
    %v52 = vld [vmem:[#allocation4 + $0xc] sm:$0xf]
    %v53 = vld [vmem:[#allocation4 + $0x10] sm:$0xf]
    %v54 = vld [vmem:[#allocation4 + $0x14] sm:$0xf]
    %v55 = vld [vmem:[#allocation4 + $0x18] sm:$0xf]
    %v56 = vld [vmem:[#allocation4 + $0x1c] sm:$0xf]
    %v57 = vld [vmem:[#allocation4 + $0x20] sm:$0xf]
    %v58 = vld [vmem:[#allocation4 + $0x24] sm:$0xf]
    %v59 = vld [vmem:[#allocation4 + $0x28] sm:$0xf]
    %v60 = vld [vmem:[#allocation4 + $0x2c] sm:$0xf]
    %v61 = vld [vmem:[#allocation4 + $0x30] sm:$0xf]
    %v62 = vld [vmem:[#allocation4 + $0x34] sm:$0xf]
    %v63 = vld [vmem:[#allocation4 + $0x38] sm:$0xf]
    %v64 = vld [vmem:[#allocation4 + $0x3c] sm:$0xf]
    %v65 = vld [vmem:[#allocation4 + $0x40] sm:$0xf]
    %v66 = vld [vmem:[#allocation4 + $0x44] sm:$0xf]
    %v67 = vld [vmem:[#allocation4 + $0x48] sm:$0xf]
    %v68 = vld [vmem:[#allocation4 + $0x4c] sm:$0xf]
    %v69 = vld [vmem:[#allocation4 + $0x50] sm:$0xf]
    %v70 = vld [vmem:[#allocation4 + $0x54] sm:$0xf]
    %v71 = vld [vmem:[#allocation4 + $0x58] sm:$0xf]
    %v72 = vld [vmem:[#allocation4 + $0x5c] sm:$0xf]
    %v73 = vld [vmem:[#allocation4 + $0x60] sm:$0xf]
    %v74 = vld [vmem:[#allocation4 + $0x64] sm:$0xf]
    %v75 = vld [vmem:[#allocation4 + $0x68] sm:$0xf]
    %v76 = vld [vmem:[#allocation4 + $0x6c] sm:$0xf]
    %v77 = vld [vmem:[#allocation4 + $0x70] sm:$0xf]
    %v78 = vld [vmem:[#allocation4 + $0x74] sm:$0xf]
    %v79 = vld [vmem:[#allocation4 + $0x78] sm:$0xf]
    %v80 = vld [vmem:[#allocation4 + $0x7c] sm:$0xf]
    %v81 = vld [vmem:[#allocation4 + $0x80] sm:$0xf]
    %v82 = vld [vmem:[#allocation4 + $0x84] sm:$0xf]
    %v83 = vld [vmem:[#allocation4 + $0x88] sm:$0xf]
    %v84 = vld [vmem:[#allocation4 + $0x8c] sm:$0xf]
    %v85 = vld [vmem:[#allocation4 + $0x90] sm:$0xf]
    %v86 = vld [vmem:[#allocation4 + $0x94] sm:$0xf]
    %v87 = vld [vmem:[#allocation4 + $0x98] sm:$0xf]
    %v88 = vld [vmem:[#allocation4 + $0x9c] sm:$0xf]
    %v89 = vld [vmem:[#allocation4 + $0xa0] sm:$0xf]
    %v90 = vld [vmem:[#allocation4 + $0xa4] sm:$0xf]
    %v91 = vld [vmem:[#allocation4 + $0xa8] sm:$0xf]
    %v92 = vld [vmem:[#allocation4 + $0xac] sm:$0xf]
    %v93 = vld [vmem:[#allocation4 + $0xb0] sm:$0xf]
    %v94 = vld [vmem:[#allocation4 + $0xb4] sm:$0xf]
    %v95 = vld [vmem:[#allocation4 + $0xb8] sm:$0xf]
    %v96 = vld [vmem:[#allocation4 + $0xbc] sm:$0xf]
    %v97 = vld [vmem:[#allocation4 + $0xc0] sm:$0xf]
    %v98 = vld [vmem:[#allocation4 + $0xc4] sm:$0xf]
    %v99 = vld [vmem:[#allocation4 + $0xc8] sm:$0xf]
    %v100 = vld [vmem:[#allocation4 + $0xcc] sm:$0xf]
    %v101 = vld [vmem:[#allocation4 + $0xd0] sm:$0xf]
    %v102 = vld [vmem:[#allocation4 + $0xd4] sm:$0xf]
    %v103 = vld [vmem:[#allocation4 + $0xd8] sm:$0xf]
    %v104 = vld [vmem:[#allocation4 + $0xdc] sm:$0xf]
    %v105 = vld [vmem:[#allocation4 + $0xe0] sm:$0xf]
    %v106 = vld [vmem:[#allocation4 + $0xe4] sm:$0xf]
    %v107 = vld [vmem:[#allocation4 + $0xe8] sm:$0xf]
    %v108 = vld [vmem:[#allocation4 + $0xec] sm:$0xf]
    %v109 = vld [vmem:[#allocation4 + $0xf0] sm:$0xf]
    %v110 = vld [vmem:[#allocation4 + $0xf4] sm:$0xf]
    %v111 = vld [vmem:[#allocation4 + $0xf8] sm:$0xf]
    %v112 = vld [vmem:[#allocation4 + $0xfc] sm:$0xf]
    %v113 = vld [vmem:[#allocation4 + $0x100] sm:$0xf]
    %v114 = vld [vmem:[#allocation4 + $0x104] sm:$0xf]
    %v115 = vld [vmem:[#allocation4 + $0x108] sm:$0xf]
    %v116 = vld [vmem:[#allocation4 + $0x10c] sm:$0xf]
    %v117 = vld [vmem:[#allocation4 + $0x110] sm:$0xf]
    %v118 = vld [vmem:[#allocation4 + $0x114] sm:$0xf]
    %v119 = vld [vmem:[#allocation4 + $0x118] sm:$0xf]
    %v120 = vld [vmem:[#allocation4 + $0x11c] sm:$0xf]
    %v121 = vld [vmem:[#allocation4 + $0x120] sm:$0xf]
    %v122 = vld [vmem:[#allocation4 + $0x124] sm:$0xf]
    %v123 = vld [vmem:[#allocation4 + $0x128] sm:$0xf]
    %v124 = vld [vmem:[#allocation4 + $0x12c] sm:$0xf]
    %v125 = vld [vmem:[#allocation4 + $0x130] sm:$0xf]
    %v126 = vld [vmem:[#allocation4 + $0x134] sm:$0xf]
    %v127 = vld [vmem:[#allocation4 + $0x138] sm:$0xf]
    %v128 = vld [vmem:[#allocation4 + $0x13c] sm:$0xf]
    %v129 = vld [vmem:[#allocation4 + $0x140] sm:$0xf]
    %v130 = vld [vmem:[#allocation4 + $0x144] sm:$0xf]
    %v131 = vld [vmem:[#allocation4 + $0x148] sm:$0xf]
    %v132 = vld [vmem:[#allocation4 + $0x14c] sm:$0xf]
    %v133 = vld [vmem:[#allocation4 + $0x150] sm:$0xf]
    %v134 = vld [vmem:[#allocation4 + $0x154] sm:$0xf]
    %v135 = vld [vmem:[#allocation4 + $0x158] sm:$0xf]
    %v136 = vld [vmem:[#allocation4 + $0x15c] sm:$0xf]
    %v137 = vld [vmem:[#allocation4 + $0x160] sm:$0xf]
    %v138 = vld [vmem:[#allocation4 + $0x164] sm:$0xf]
    %v139 = vld [vmem:[#allocation4 + $0x168] sm:$0xf]
    %v140 = vld [vmem:[#allocation4 + $0x16c] sm:$0xf]
    %v141 = vld [vmem:[#allocation4 + $0x170] sm:$0xf]
    %v142 = vld [vmem:[#allocation4 + $0x174] sm:$0xf]
    %v143 = vld [vmem:[#allocation4 + $0x178] sm:$0xf]
    %v144 = vld [vmem:[#allocation4 + $0x17c] sm:$0xf]
    %v145 = vld [vmem:[%s2] sm:$0x1]
    %v146 = vld [vmem:[%s2 + $0x1] sm:$0x1]
    %v147 = vld [vmem:[%s2 + $0x2] sm:$0x1]
    %v148 = vlaneseq
    %v149 = vshrl.u32 %v148, 7
    %v150 = vsub.s32 0, %v149
    %v151 = vrot.slane %v145, %v150
    %v216 = vunpack.c.l.b16 %v49
    %v217 = vunpack.c.l.b16 %v50
    %v218 = vunpack.c.l.b16 %v51
    %v219 = vunpack.c.l.b16 %v52
    %v220 = vunpack.c.l.b16 %v53
    %v221 = vunpack.c.l.b16 %v54
    %v222 = vunpack.c.l.b16 %v55
    %v223 = vunpack.c.l.b16 %v56
    %v224 = vunpack.c.l.b16 %v57
    %v225 = vunpack.c.l.b16 %v58
    %v226 = vunpack.c.l.b16 %v59
    %v227 = vunpack.c.l.b16 %v60
    %v228 = vunpack.c.l.b16 %v61
    %v229 = vunpack.c.l.b16 %v62
    %v230 = vunpack.c.l.b16 %v63
    %v231 = vunpack.c.l.b16 %v64
    %v232 = vunpack.c.l.b16 %v65
    %v233 = vunpack.c.l.b16 %v66
    %v234 = vunpack.c.l.b16 %v67
    %v235 = vunpack.c.l.b16 %v68
    %v236 = vunpack.c.l.b16 %v69
    %v237 = vunpack.c.l.b16 %v70
    %v238 = vunpack.c.l.b16 %v71
    %v239 = vunpack.c.l.b16 %v72
    %v240 = vunpack.c.l.b16 %v73
    %v241 = vunpack.c.l.b16 %v74
    %v242 = vunpack.c.l.b16 %v75
    %v243 = vunpack.c.l.b16 %v76
    %v244 = vunpack.c.l.b16 %v77
    %v245 = vunpack.c.l.b16 %v78
    %v246 = vunpack.c.l.b16 %v79
    %v247 = vunpack.c.l.b16 %v80
    %v248 = vunpack.c.l.b16 %v81
    %v249 = vunpack.c.l.b16 %v82
    %v250 = vunpack.c.l.b16 %v83
    %v251 = vunpack.c.l.b16 %v84
    %v252 = vunpack.c.l.b16 %v85
    %v253 = vunpack.c.l.b16 %v86
    %v254 = vunpack.c.l.b16 %v87
    %v255 = vunpack.c.l.b16 %v88
    %v256 = vunpack.c.l.b16 %v89
    %v257 = vunpack.c.l.b16 %v90
    %v258 = vunpack.c.l.b16 %v91
    %v259 = vunpack.c.l.b16 %v92
    %v260 = vunpack.c.l.b16 %v93
    %v261 = vunpack.c.l.b16 %v94
    %v262 = vunpack.c.l.b16 %v95
    %v263 = vunpack.c.l.b16 %v96
    %v264 = vunpack.c.l.b16 %v97
    %v265 = vunpack.c.l.b16 %v98
    %v266 = vunpack.c.l.b16 %v99
    %v267 = vunpack.c.l.b16 %v100
    %v268 = vunpack.c.l.b16 %v101
    %v269 = vunpack.c.l.b16 %v102
    %v270 = vunpack.c.l.b16 %v103
    %v271 = vunpack.c.l.b16 %v104
    %v272 = vunpack.c.l.b16 %v105
    %v273 = vunpack.c.l.b16 %v106
    %v274 = vunpack.c.l.b16 %v107
    %v275 = vunpack.c.l.b16 %v108
    %v276 = vunpack.c.l.b16 %v109
    %v277 = vunpack.c.l.b16 %v110
    %v278 = vunpack.c.l.b16 %v111
    %v279 = vunpack.c.l.b16 %v112
    %v280 = vpack.c.b16 %v217, %v216
    %v281 = vpack.c.b16 %v219, %v218
    %v282 = vpack.c.b16 %v221, %v220
    %v283 = vpack.c.b16 %v223, %v222
    %v284 = vpack.c.b16 %v225, %v224
    %v285 = vpack.c.b16 %v227, %v226
    %v286 = vpack.c.b16 %v229, %v228
    %v287 = vpack.c.b16 %v231, %v230
    %v288 = vpack.c.b16 %v233, %v232
    %v289 = vpack.c.b16 %v235, %v234
    %v290 = vpack.c.b16 %v237, %v236
    %v291 = vpack.c.b16 %v239, %v238
    %v292 = vpack.c.b16 %v241, %v240
    %v293 = vpack.c.b16 %v243, %v242
    %v294 = vpack.c.b16 %v245, %v244
    %v295 = vpack.c.b16 %v247, %v246
    %v296 = vpack.c.b16 %v249, %v248
    %v297 = vpack.c.b16 %v251, %v250
    %v298 = vpack.c.b16 %v253, %v252
    %v299 = vpack.c.b16 %v255, %v254
    %v300 = vpack.c.b16 %v257, %v256
    %v301 = vpack.c.b16 %v259, %v258
    %v302 = vpack.c.b16 %v261, %v260
    %v303 = vpack.c.b16 %v263, %v262
    %v304 = vpack.c.b16 %v265, %v264
    %v305 = vpack.c.b16 %v267, %v266
    %v306 = vpack.c.b16 %v269, %v268
    %v307 = vpack.c.b16 %v271, %v270
    %v308 = vpack.c.b16 %v273, %v272
    %v309 = vpack.c.b16 %v275, %v274
    %v310 = vpack.c.b16 %v277, %v276
    %v311 = vpack.c.b16 %v279, %v278
    %344 = vmatprep.subr.bf16.mxu0 0
    %345 = vmatpush1.bf16.msra.mxu0 %v280
    %346 = vmatprep.subr.bf16.mxu0 0
    %347 = vmatpush1.bf16.msra.mxu0 %v281
    %348 = vmatprep.subr.bf16.mxu0 0
    %349 = vmatpush1.bf16.msra.mxu0 %v282
    %350 = vmatprep.subr.bf16.mxu0 0
    %351 = vmatpush1.bf16.msra.mxu0 %v283
    %352 = vmatprep.subr.bf16.mxu0 0
    %353 = vmatpush1.bf16.msra.mxu0 %v284
    %354 = vmatprep.subr.bf16.mxu0 0
    %355 = vmatpush1.bf16.msra.mxu0 %v285
    %356 = vmatprep.subr.bf16.mxu0 0
    %357 = vmatpush1.bf16.msra.mxu0 %v286
    %358 = vmatprep.subr.bf16.mxu0 0
    %359 = vmatpush1.bf16.msra.mxu0 %v287
    %360 = vmatprep.subr.bf16.mxu0 0
    %361 = vmatpush1.bf16.msra.mxu0 %v288
    %362 = vmatprep.subr.bf16.mxu0 0
    %363 = vmatpush1.bf16.msra.mxu0 %v289
    %364 = vmatprep.subr.bf16.mxu0 0
    %365 = vmatpush1.bf16.msra.mxu0 %v290
    %366 = vmatprep.subr.bf16.mxu0 0
    %367 = vmatpush1.bf16.msra.mxu0 %v291
    %368 = vmatprep.subr.bf16.mxu0 0
    %369 = vmatpush1.bf16.msra.mxu0 %v292
    %370 = vmatprep.subr.bf16.mxu0 0
    %371 = vmatpush1.bf16.msra.mxu0 %v293
    %372 = vmatprep.subr.bf16.mxu0 0
    %373 = vmatpush1.bf16.msra.mxu0 %v294
    %374 = vmatprep.subr.bf16.mxu0 0
    %375 = vmatpush1.bf16.msra.mxu0 %v295
    %376 = vmatprep.mubr.bf16.mxu0 %v46
    %377 = vmatmul.mubr.bf16.gmra.mrb[0].mxu0 %v45
    %v378 = vpop.f32.mrb[0].mxu0
    %v379 = vadd.f32 %v151, %v378
    %v380 = vpop.f32.mrb[0].mxu0
    %v381 = vpop.f32.mrb[0].mxu0
    %v382 = vpop.f32.mrb[0].mxu0
    %383 = vdwg.mxu0
    %384 = vmatprep.subr.bf16.mxu0 0
    %385 = vmatpush1.bf16.msra.mxu0 %v296
    %386 = vmatprep.subr.bf16.mxu0 0
    %387 = vmatpush1.bf16.msra.mxu0 %v297
    %388 = vmatprep.subr.bf16.mxu0 0
    %389 = vmatpush1.bf16.msra.mxu0 %v298
    %390 = vmatprep.subr.bf16.mxu0 0
    %391 = vmatpush1.bf16.msra.mxu0 %v299
    %392 = vmatprep.subr.bf16.mxu0 0
    %393 = vmatpush1.bf16.msra.mxu0 %v300
    %394 = vmatprep.subr.bf16.mxu0 0
    %395 = vmatpush1.bf16.msra.mxu0 %v301
    %396 = vmatprep.subr.bf16.mxu0 0
    %397 = vmatpush1.bf16.msra.mxu0 %v302
    %398 = vmatprep.subr.bf16.mxu0 0
    %399 = vmatpush1.bf16.msra.mxu0 %v303
    %400 = vmatprep.subr.bf16.mxu0 0
    %401 = vmatpush1.bf16.msra.mxu0 %v304
    %402 = vmatprep.subr.bf16.mxu0 0
    %403 = vmatpush1.bf16.msra.mxu0 %v305
    %404 = vmatprep.subr.bf16.mxu0 0
    %405 = vmatpush1.bf16.msra.mxu0 %v306
    %406 = vmatprep.subr.bf16.mxu0 0
    %407 = vmatpush1.bf16.msra.mxu0 %v307
    %408 = vmatprep.subr.bf16.mxu0 0
    %409 = vmatpush1.bf16.msra.mxu0 %v308
    %410 = vmatprep.subr.bf16.mxu0 0
    %411 = vmatpush1.bf16.msra.mxu0 %v309
    %412 = vmatprep.subr.bf16.mxu0 0
    %413 = vmatpush1.bf16.msra.mxu0 %v310
    %414 = vmatprep.subr.bf16.mxu0 0
    %415 = vmatpush1.bf16.msra.mxu0 %v311
    %416 = vmatprep.mubr.bf16.mxu0 %v48
    %417 = vmatmul.mubr.bf16.gmra.mrb[0].mxu0 %v47
    %v418 = vpop.f32.mrb[0].mxu0
    %v419 = vadd.f32 %v379, %v418
    %v420 = vpop.f32.mrb[0].mxu0
    %v421 = vpop.f32.mrb[0].mxu0
    %v422 = vpop.f32.mrb[0].mxu0
    %423 = vdwg.mxu0
    %v424 = vmax.f32 %v419, 0.0
    %v425 = vpack.c.bf16 %v424, %v424
    %v426 = vlaneseq
    %v427 = vshrl.u32 %v426, 7
    %v428 = vsub.s32 0, %v427
    %v429 = vrot.slane %v146, %v428
    %v446 = vunpack.c.l.b16 %v113
    %v447 = vunpack.c.l.b16 %v114
    %v448 = vunpack.c.l.b16 %v115
    %v449 = vunpack.c.l.b16 %v116
    %v450 = vunpack.c.l.b16 %v117
    %v451 = vunpack.c.l.b16 %v118
    %v452 = vunpack.c.l.b16 %v119
    %v453 = vunpack.c.l.b16 %v120
    %v454 = vunpack.c.l.b16 %v121
    %v455 = vunpack.c.l.b16 %v122
    %v456 = vunpack.c.l.b16 %v123
    %v457 = vunpack.c.l.b16 %v124
    %v458 = vunpack.c.l.b16 %v125
    %v459 = vunpack.c.l.b16 %v126
    %v460 = vunpack.c.l.b16 %v127
    %v461 = vunpack.c.l.b16 %v128
    %v462 = vpack.c.b16 %v447, %v446
    %v463 = vpack.c.b16 %v449, %v448
    %v464 = vpack.c.b16 %v451, %v450
    %v465 = vpack.c.b16 %v453, %v452
    %v466 = vpack.c.b16 %v455, %v454
    %v467 = vpack.c.b16 %v457, %v456
    %v468 = vpack.c.b16 %v459, %v458
    %v469 = vpack.c.b16 %v461, %v460
    %478 = vmatprep.subr.bf16.mxu0 0
    %479 = vmatpush1.bf16.msra.mxu0 %v462
    %480 = vmatprep.subr.bf16.mxu0 0
    %481 = vmatpush1.bf16.msra.mxu0 %v463
    %482 = vmatprep.subr.bf16.mxu0 0
    %483 = vmatpush1.bf16.msra.mxu0 %v464
    %484 = vmatprep.subr.bf16.mxu0 0
    %485 = vmatpush1.bf16.msra.mxu0 %v465
    %486 = vmatprep.subr.bf16.mxu0 0
    %487 = vmatpush1.bf16.msra.mxu0 %v466
    %488 = vmatprep.subr.bf16.mxu0 0
    %489 = vmatpush1.bf16.msra.mxu0 %v467
    %490 = vmatprep.subr.bf16.mxu0 0
    %491 = vmatpush1.bf16.msra.mxu0 %v468
    %492 = vmatprep.subr.bf16.mxu0 0
    %493 = vmatpush1.bf16.msra.mxu0 %v469
    %494 = vmatprep.subr.bf16.mxu0 0
    %495 = vmatpush1.bf16.msra.mxu0 0
    %496 = vmatprep.subr.bf16.mxu0 0
    %497 = vmatpush1.bf16.msra.mxu0 0
    %498 = vmatprep.subr.bf16.mxu0 0
    %499 = vmatpush1.bf16.msra.mxu0 0
    %500 = vmatprep.subr.bf16.mxu0 0
    %501 = vmatpush1.bf16.msra.mxu0 0
    %502 = vmatprep.subr.bf16.mxu0 0
    %503 = vmatpush1.bf16.msra.mxu0 0
    %504 = vmatprep.subr.bf16.mxu0 0
    %505 = vmatpush1.bf16.msra.mxu0 0
    %506 = vmatprep.subr.bf16.mxu0 0
    %507 = vmatpush1.bf16.msra.mxu0 0
    %508 = vmatprep.subr.bf16.mxu0 0
    %509 = vmatpush1.bf16.msra.mxu0 0
    %510 = vmatprep.mubr.bf16.mxu0 0
    %511 = vmatmul.mubr.bf16.gmra.mrb[0].mxu0 %v425
    %v512 = vpop.f32.mrb[0].mxu0
    %v513 = vadd.f32 %v429, %v512
    %v514 = vpop.f32.mrb[0].mxu0
    %v515 = vpop.f32.mrb[0].mxu0
    %v516 = vpop.f32.mrb[0].mxu0
    %517 = vdwg.mxu0
    %v518 = vmax.f32 %v513, 0.0
    %v519 = vpack.c.bf16 %v518, %v518
    %v520 = vlaneseq
    %v521 = vshrl.u32 %v520, 7
    %v522 = vsub.s32 0, %v521
    %v523 = vrot.slane %v147, %v522
    %v540 = vunpack.c.l.b16 %v129
    %v541 = vunpack.c.l.b16 %v130
    %v542 = vunpack.c.l.b16 %v131
    %v543 = vunpack.c.l.b16 %v132
    %v544 = vunpack.c.l.b16 %v133
    %v545 = vunpack.c.l.b16 %v134
    %v546 = vunpack.c.l.b16 %v135
    %v547 = vunpack.c.l.b16 %v136
    %v548 = vunpack.c.l.b16 %v137
    %v549 = vunpack.c.l.b16 %v138
    %v550 = vunpack.c.l.b16 %v139
    %v551 = vunpack.c.l.b16 %v140
    %v552 = vunpack.c.l.b16 %v141
    %v553 = vunpack.c.l.b16 %v142
    %v554 = vunpack.c.l.b16 %v143
    %v555 = vunpack.c.l.b16 %v144
    %v556 = vpack.c.b16 %v541, %v540
    %v557 = vpack.c.b16 %v543, %v542
    %v558 = vpack.c.b16 %v545, %v544
    %v559 = vpack.c.b16 %v547, %v546
    %v560 = vpack.c.b16 %v549, %v548
    %v561 = vpack.c.b16 %v551, %v550
    %v562 = vpack.c.b16 %v553, %v552
    %v563 = vpack.c.b16 %v555, %v554
    %572 = vmatprep.subr.bf16.mxu0 0
    %573 = vmatpush1.bf16.msra.mxu0 %v556
    %574 = vmatprep.subr.bf16.mxu0 0
    %575 = vmatpush1.bf16.msra.mxu0 %v557
    %576 = vmatprep.subr.bf16.mxu0 0
    %577 = vmatpush1.bf16.msra.mxu0 %v558
    %578 = vmatprep.subr.bf16.mxu0 0
    %579 = vmatpush1.bf16.msra.mxu0 %v559
    %580 = vmatprep.subr.bf16.mxu0 0
    %581 = vmatpush1.bf16.msra.mxu0 %v560
    %582 = vmatprep.subr.bf16.mxu0 0
    %583 = vmatpush1.bf16.msra.mxu0 %v561
    %584 = vmatprep.subr.bf16.mxu0 0
    %585 = vmatpush1.bf16.msra.mxu0 %v562
    %586 = vmatprep.subr.bf16.mxu0 0
    %587 = vmatpush1.bf16.msra.mxu0 %v563
    %588 = vmatprep.subr.bf16.mxu0 0
    %589 = vmatpush1.bf16.msra.mxu0 0
    %590 = vmatprep.subr.bf16.mxu0 0
    %591 = vmatpush1.bf16.msra.mxu0 0
    %592 = vmatprep.subr.bf16.mxu0 0
    %593 = vmatpush1.bf16.msra.mxu0 0
    %594 = vmatprep.subr.bf16.mxu0 0
    %595 = vmatpush1.bf16.msra.mxu0 0
    %596 = vmatprep.subr.bf16.mxu0 0
    %597 = vmatpush1.bf16.msra.mxu0 0
    %598 = vmatprep.subr.bf16.mxu0 0
    %599 = vmatpush1.bf16.msra.mxu0 0
    %600 = vmatprep.subr.bf16.mxu0 0
    %601 = vmatpush1.bf16.msra.mxu0 0
    %602 = vmatprep.subr.bf16.mxu0 0
    %603 = vmatpush1.bf16.msra.mxu0 0
    %604 = vmatprep.mubr.bf16.mxu0 0
    %605 = vmatmul.mubr.bf16.gmra.mrb[0].mxu0 %v519
    %v606 = vpop.f32.mrb[0].mxu0
    %v607 = vadd.f32 %v523, %v606
    %v608 = vpop.f32.mrb[0].mxu0
    %v609 = vpop.f32.mrb[0].mxu0
    %v610 = vpop.f32.mrb[0].mxu0
    %611 = vdwg.mxu0
    %612 = vmax.xlane.f32.xlu0 %v607
    %v613 = vpop.xlane.xlu0 %612
    %v614 = vsub.f32 %v607, %v613
    %v615 = vmul.f32 %v614, 1.442695
    %v616 = vpow.pop %v615
    %617 = vadd.xlane.f32.xlu0 %v616
    %v618 = vpop.xlane.xlu0 %617
    %v619 = vrcp.pop %v618
    %v620 = vmul.f32 %v616, %v619
    %v621 = vpack.c.bf16 %v620, %v620
    %622 = vst [vmem:[%s3] sm:$0xf] %v621
    // Predicated region
    $region22: #{forward.1} parent=1 // pred_check
      _
    $region23: #{forward.1} parent=1 // pred_check_branch
      %624 = sbr.rel (0) target = $region25
    $region24: #{forward.1} parent=1 // pred_region
      _
    $region25: #{forward.1} parent=1 // pred_fallthru
      _
    // Predicated region
    $region26: #{forward.1} parent=1 // pred_check
      _
    $region27: #{forward.1} parent=1 // pred_check_branch
      %626 = sbr.rel (0) target = $region29
    $region28: #{forward.1} parent=1 // pred_region
      _
    $region29: #{forward.1} parent=1 // pred_fallthru
      _
    %627 = vsyncpa [#allocation3], 1
    %628 = vsyncpa [#allocation5], 1

</llo_original>
